<compile_context>
chip_gen: v6e
topology: v6e:2x2x1
jax: 0.10.0
libtpu: 0.0.40
codegen_flags: <defaults>
</compile_context>

<pallas_src>
import jax
import jax.numpy as jnp
from jax import lax
from jax.experimental import pallas as pl
from jax.experimental.pallas import tpu as pltpu


def _leaky_relu(x, slope=0.01):
    return jnp.where(x > 0, x, slope * x)


def valuenet_kernel(state_ref, dr_ref, hz_ref,
                    w1_ref, b1_ref, w2dr_ref, w2h_ref, b2_ref,
                    w3_ref, b3_ref, w4t_ref, b4t_ref,
                    out_ref):
    f32 = jnp.float32
    bf16 = jnp.bfloat16

    # ---- state embedding: bf16 MXU matmul (K=state_dim), f32 accumulate.
    s = _leaky_relu(
        jnp.dot(state_ref[...].astype(bf16), w1_ref[...],
                preferred_element_type=f32) + b1_ref[...])

    # ---- command embedding entirely on the VPU.  The (tb, rd+1)@(rd+1, H)
    # matmul has K=5, N=64 (~1-2% MXU utilization but ~25% of the vmatmul
    # pushes), so expand it as rd+1 rank-1 broadcast multiply-adds instead.
    # scaling_factor was folded into w2 at prep time; everything stays f32.
    dr = dr_ref[...]                                       # (tb, rd)  f32
    w2dr = w2dr_ref[...]                                   # (rd, H)   f32
    c_lin = hz_ref[...] * w2h_ref[...] + b2_ref[...]       # (tb,1)*(1,H)+(1,H)
    for k in range(dr_ref.shape[1]):                       # unrolled, rd tiny
        c_lin = c_lin + dr[:, k:k + 1] * w2dr[k:k + 1, :]
    r = _leaky_relu(c_lin)

    # ---- fused head: tanh MLP on s * r (K=N=hidden MXU matmul).
    h = jnp.tanh(
        jnp.dot((s * r).astype(bf16), w3_ref[...],
                preferred_element_type=f32) + b3_ref[...])

    # ---- output head computed transposed: (rd,H) contracted with (tb,H)
    # over H -> (rd, tb).  Lane-dense stores (no 4-lane masked vst) and far
    # fewer MXU pushes than the (tb,H)@(H,rd) form.
    out_t = lax.dot_general(
        w4t_ref[...], h.astype(bf16),
        dimension_numbers=(((1,), (1,)), ((), ())),
        preferred_element_type=f32) + b4t_ref[...]
    out_ref[...] = out_t.astype(out_ref.dtype)


def prep_params(params, reward_dim, scaling_factor):
    """One-time parameter prep:
       * split W2 into reward / horizon parts, fold scaling_factor in (f32,
         these rows are used on the VPU, not the MXU),
       * cast the MXU weights (W1, W3, W4) to bf16,
       * store the output head transposed: W4^T (rd, H) bf16, b4^T (rd, 1) f32."""
    w1, b1, w2, b2, w3, b3, w4, b4 = params
    bf16 = jnp.bfloat16
    scale = scaling_factor.reshape(-1).astype(jnp.float32)          # (rd+1,)
    w2_dr = (w2[:reward_dim, :] * scale[:reward_dim, None]).astype(jnp.float32)
    w2_h = (w2[reward_dim:, :] * scale[reward_dim:, None]).astype(jnp.float32)
    return (w1.astype(bf16), b1,
            w2_dr, w2_h, b2,
            w3.astype(bf16), b3,
            jnp.transpose(w4).astype(bf16), jnp.transpose(b4))


def _round_up(x, m):
    return ((x + m - 1) // m) * m


def _choose_tile_b(batch, max_tile=2048, split_threshold=1024):
    """Small batches: one full-array block (always a legal BlockSpec).
    Larger batches: >=2 grid steps (so v7x megacore sharding engages),
    tile rounded to 128 (lane dim of the transposed output block) and capped
    at 2048 rows so live f32 intermediates stay well under the 16 MiB v5e
    scoped-VMEM default."""
    if batch <= split_threshold:
        return batch
    n_steps = max(2, pl.cdiv(batch, max_tile))
    return min(max_tile, _round_up(pl.cdiv(batch, n_steps), 128))


def value_net_forward(state, desired_return, horizon, prepped):
    batch, state_dim = state.shape
    reward_dim = desired_return.shape[1]
    (w1, b1, w2_dr, w2_h, b2, w3, b3, w4_t, b4_t) = prepped
    hidden_dim = w1.shape[1]

    tile_b = _choose_tile_b(batch)
    grid = (pl.cdiv(batch, tile_b),)

    def batch_spec(feat):
        return pl.BlockSpec((tile_b, feat), lambda i: (i, 0))

    def resident_spec(arr):
        return pl.BlockSpec(arr.shape, lambda i: (0, 0))

    in_specs = [
        batch_spec(state_dim),                     # state
        batch_spec(reward_dim),                    # desired_return
        batch_spec(1),                             # horizon
        resident_spec(w1), resident_spec(b1),
        resident_spec(w2_dr), resident_spec(w2_h), resident_spec(b2),
        resident_spec(w3), resident_spec(b3),
        resident_spec(w4_t), resident_spec(b4_t),
    ]
    # Transposed output: (reward_dim, batch); block lane dim = tile_b.
    out_spec = pl.BlockSpec((reward_dim, tile_b), lambda i: (0, i))

    flops = 2 * batch * (state_dim * hidden_dim
                         + (reward_dim + 1) * hidden_dim
                         + hidden_dim * hidden_dim
                         + hidden_dim * reward_dim)
    bytes_accessed = (
        4 * batch * (state_dim + reward_dim + 1 + reward_dim)
        + 2 * (state_dim * hidden_dim + hidden_dim * hidden_dim
               + hidden_dim * reward_dim)                       # bf16 weights
        + 4 * ((reward_dim + 1) * hidden_dim + 3 * hidden_dim + reward_dim))

    out_t = pl.pallas_call(
        valuenet_kernel,
        out_shape=jax.ShapeDtypeStruct((reward_dim, batch), jnp.float32),
        grid=grid,
        in_specs=in_specs,
        out_specs=out_spec,
        compiler_params=pltpu.CompilerParams(
            dimension_semantics=("parallel",),     # megacore on v7x
        ),
        cost_estimate=pl.CostEstimate(
            flops=flops,
            transcendentals=batch * hidden_dim,    # tanh
            bytes_accessed=bytes_accessed),
    )(state, desired_return, horizon,
      w1, b1, w2_dr, w2_h, b2, w3, b3, w4_t, b4_t)
    return out_t.T


def init_params(key, state_dim, reward_dim, hidden_dim):
    """PyTorch-Linear-like init (U[-1/sqrt(fan_in), +1/sqrt(fan_in)]).
    Weights stored transposed vs. PyTorch: (in_features, out_features)."""
    def linear(k, fan_in, fan_out):
        kw, kb = jax.random.split(k)
        bound = 1.0 / float(fan_in) ** 0.5
        w = jax.random.uniform(kw, (fan_in, fan_out), jnp.float32, -bound, bound)
        b = jax.random.uniform(kb, (1, fan_out), jnp.float32, -bound, bound)
        return w, b

    k1, k2, k3, k4 = jax.random.split(key, 4)
    w1, b1 = linear(k1, state_dim, hidden_dim)          # state_emb
    w2, b2 = linear(k2, reward_dim + 1, hidden_dim)     # c_emb
    w3, b3 = linear(k3, hidden_dim, hidden_dim)         # fc[0]
    w4, b4 = linear(k4, hidden_dim, reward_dim)         # fc[2]
    return (w1, b1, w2, b2, w3, b3, w4, b4)


def reference_forward_prepped(state, desired_return, horizon, prepped):
    """Pure-JAX reference mirroring the kernel math exactly (same bf16 casts,
    rank-1 command expansion, transposed head)."""
    w1, b1, w2_dr, w2_h, b2, w3, b3, w4_t, b4_t = prepped
    bf16, f32 = jnp.bfloat16, jnp.float32
    s = _leaky_relu(jnp.dot(state.astype(bf16), w1,
                            preferred_element_type=f32) + b1)
    c_lin = horizon * w2_h + b2
    for k in range(desired_return.shape[1]):
        c_lin = c_lin + desired_return[:, k:k + 1] * w2_dr[k:k + 1, :]
    r = _leaky_relu(c_lin)
    h = jnp.tanh(jnp.dot((s * r).astype(bf16), w3,
                         preferred_element_type=f32) + b3)
    out_t = jnp.dot(w4_t, h.astype(bf16).T, preferred_element_type=f32) + b4_t
    return out_t.T


def reference_forward_f32(state, desired_return, horizon, scaling_factor, params):
    """Pure f32 reference matching the PyTorch module (sanity check for bf16)."""
    w1, b1, w2, b2, w3, b3, w4, b4 = params
    s = _leaky_relu(state @ w1 + b1)
    c = jnp.concatenate([desired_return, horizon], axis=1) * scaling_factor
    r = _leaky_relu(c @ w2 + b2)
    h = jnp.tanh((s * r) @ w3 + b3)
    return h @ w4 + b4


if __name__ == "__main__":
    state_dim, reward_dim, hidden_dim = 16, 4, 64
    # one scale per command entry (reward_dim + 1), broadcast over batch
    scaling_factor = jnp.array([[0.1, 0.1, 0.1, 0.1, 0.01]], jnp.float32)

    key = jax.random.PRNGKey(0)
    k_params, k_data = jax.random.split(key)
    params_f32 = init_params(k_params, state_dim, reward_dim, hidden_dim)
    prepped = prep_params(params_f32, reward_dim, scaling_factor)

    forward = jax.jit(value_net_forward)

    # batch=8: single full-array tile; batch=1280: 2-step grid (tile_b=640).
    for batch in (8, 1280):
        ks, kr, kh = jax.random.split(jax.random.fold_in(k_data, batch), 3)
        state = jax.random.normal(ks, (batch, state_dim), jnp.float32)
        desired_return = jax.random.normal(kr, (batch, reward_dim), jnp.float32)
        horizon = jax.random.uniform(kh, (batch, 1), jnp.float32, 1.0, 10.0)

        pred = jax.block_until_ready(
            forward(state, desired_return, horizon, prepped))
        assert pred.shape == (batch, reward_dim)

        # Exact-math reference (same bf16 casts / op order): tight tolerance.
        ref_bf16 = reference_forward_prepped(state, desired_return, horizon,
                                             prepped)
        assert jnp.allclose(pred, ref_bf16, atol=2e-3, rtol=2e-3), \
            f"batch={batch}: mismatch vs. bf16-matched JAX reference"

        # Full-precision PyTorch-equivalent reference: loose tolerance.
        ref_f32 = reference_forward_f32(state, desired_return, horizon,
                                        scaling_factor, params_f32)
        assert jnp.allclose(pred, ref_f32, atol=1e-1, rtol=0.0), \
            f"batch={batch}: mismatch vs. f32 reference beyond bf16 budget"

    print("KERNEL_OK")
</pallas_src>

<mosaic_0001>
module attributes {stable_mosaic.version = 11 : i64} {
  func.func @valuenet_kernel(%arg0: i32, %arg1: memref<8x16xf32, #tpu.memory_space<vmem>>, %arg2: memref<8x4xf32, #tpu.memory_space<vmem>>, %arg3: memref<8x1xf32, #tpu.memory_space<vmem>>, %arg4: memref<16x64xbf16, #tpu.memory_space<vmem>>, %arg5: memref<1x64xf32, #tpu.memory_space<vmem>>, %arg6: memref<4x64xf32, #tpu.memory_space<vmem>>, %arg7: memref<1x64xf32, #tpu.memory_space<vmem>>, %arg8: memref<1x64xf32, #tpu.memory_space<vmem>>, %arg9: memref<64x64xbf16, #tpu.memory_space<vmem>>, %arg10: memref<1x64xf32, #tpu.memory_space<vmem>>, %arg11: memref<4x64xbf16, #tpu.memory_space<vmem>>, %arg12: memref<4x1xf32, #tpu.memory_space<vmem>>, %arg13: memref<4x8xf32, #tpu.memory_space<vmem>>) attributes {dimension_semantics = [#tpu.dimension_semantics<parallel>], iteration_bounds = array<i64: 1>, scalar_prefetch = 0 : i64, scratch_operands = 0 : i64, tpu.core_type = #tpu.core_type<tc>, window_params = [{transform_indices = @transform_0, window_bounds = array<i64: 8, 16>}, {transform_indices = @transform_1, window_bounds = array<i64: 8, 4>}, {transform_indices = @transform_2, window_bounds = array<i64: 8, 1>}, {pipeline_mode = #tpu.pipeline_mode<synchronous>, transform_indices = @transform_3, window_bounds = array<i64: 16, 64>}, {pipeline_mode = #tpu.pipeline_mode<synchronous>, transform_indices = @transform_4, window_bounds = array<i64: 1, 64>}, {pipeline_mode = #tpu.pipeline_mode<synchronous>, transform_indices = @transform_5, window_bounds = array<i64: 4, 64>}, {pipeline_mode = #tpu.pipeline_mode<synchronous>, transform_indices = @transform_6, window_bounds = array<i64: 1, 64>}, {pipeline_mode = #tpu.pipeline_mode<synchronous>, transform_indices = @transform_7, window_bounds = array<i64: 1, 64>}, {pipeline_mode = #tpu.pipeline_mode<synchronous>, transform_indices = @transform_8, window_bounds = array<i64: 64, 64>}, {pipeline_mode = #tpu.pipeline_mode<synchronous>, transform_indices = @transform_9, window_bounds = array<i64: 1, 64>}, {pipeline_mode = #tpu.pipeline_mode<synchronous>, transform_indices = @transform_10, window_bounds = array<i64: 4, 64>}, {pipeline_mode = #tpu.pipeline_mode<synchronous>, transform_indices = @transform_11, window_bounds = array<i64: 4, 1>}, {transform_indices = @transform_12, window_bounds = array<i64: 4, 8>}]} {
    %c0 = arith.constant 0 : index
    %c0_0 = arith.constant 0 : index
    %0 = vector.load %arg1[%c0, %c0_0] : memref<8x16xf32, #tpu.memory_space<vmem>>, vector<8x16xf32>
    %1 = arith.truncf %0 : vector<8x16xf32> to vector<8x16xbf16>
    %c0_1 = arith.constant 0 : index
    %c0_2 = arith.constant 0 : index
    %2 = vector.load %arg4[%c0_1, %c0_2] : memref<16x64xbf16, #tpu.memory_space<vmem>>, vector<16x64xbf16>
    %cst = arith.constant dense<0.000000e+00> : vector<8x64xf32>
    %3 = tpu.matmul %1, %2, %cst {dimension_numbers = #tpu.dot_dimension_numbers<[1], [0], [0], [1], [0, 0, 1, 1], [], []>} : vector<8x16xbf16>, vector<16x64xbf16>, vector<8x64xf32> -> vector<8x64xf32>
    %c0_3 = arith.constant 0 : index
    %c0_4 = arith.constant 0 : index
    %4 = vector.load %arg5[%c0_3, %c0_4] : memref<1x64xf32, #tpu.memory_space<vmem>>, vector<1x64xf32>
    %5 = vector.broadcast %4 : vector<1x64xf32> to vector<8x64xf32>
    %6 = arith.addf %3, %5 : vector<8x64xf32>
    %cst_5 = arith.constant 0.000000e+00 : f32
    %7 = vector.broadcast %cst_5 : f32 to vector<8x64xf32>
    %8 = arith.cmpf ogt, %6, %7 : vector<8x64xf32>
    %cst_6 = arith.constant 0.00999999977 : f32
    %9 = vector.broadcast %cst_6 : f32 to vector<8x64xf32>
    %10 = arith.mulf %9, %6 : vector<8x64xf32>
    %11 = arith.select %8, %6, %10 : vector<8x64xi1>, vector<8x64xf32>
    %c0_7 = arith.constant 0 : index
    %c0_8 = arith.constant 0 : index
    %12 = vector.load %arg2[%c0_7, %c0_8] : memref<8x4xf32, #tpu.memory_space<vmem>>, vector<8x4xf32>
    %c0_9 = arith.constant 0 : index
    %c0_10 = arith.constant 0 : index
    %13 = vector.load %arg6[%c0_9, %c0_10] : memref<4x64xf32, #tpu.memory_space<vmem>>, vector<4x64xf32>
    %c0_11 = arith.constant 0 : index
    %c0_12 = arith.constant 0 : index
    %14 = vector.load %arg3[%c0_11, %c0_12] : memref<8x1xf32, #tpu.memory_space<vmem>>, vector<8x1xf32>
    %c0_13 = arith.constant 0 : index
    %c0_14 = arith.constant 0 : index
    %15 = vector.load %arg7[%c0_13, %c0_14] : memref<1x64xf32, #tpu.memory_space<vmem>>, vector<1x64xf32>
    %16 = vector.broadcast %14 : vector<8x1xf32> to vector<8x64xf32>
    %17 = vector.broadcast %15 : vector<1x64xf32> to vector<8x64xf32>
    %18 = arith.mulf %16, %17 : vector<8x64xf32>
    %c0_15 = arith.constant 0 : index
    %c0_16 = arith.constant 0 : index
    %19 = vector.load %arg8[%c0_15, %c0_16] : memref<1x64xf32, #tpu.memory_space<vmem>>, vector<1x64xf32>
    %20 = vector.broadcast %19 : vector<1x64xf32> to vector<8x64xf32>
    %21 = arith.addf %18, %20 : vector<8x64xf32>
    %22 = vector.extract_strided_slice %12 {offsets = [0, 0], sizes = [8, 1], strides = [1, 1]} : vector<8x4xf32> to vector<8x1xf32>
    %23 = vector.extract_strided_slice %13 {offsets = [0, 0], sizes = [1, 64], strides = [1, 1]} : vector<4x64xf32> to vector<1x64xf32>
    %24 = vector.broadcast %22 : vector<8x1xf32> to vector<8x64xf32>
    %25 = vector.broadcast %23 : vector<1x64xf32> to vector<8x64xf32>
    %26 = arith.mulf %24, %25 : vector<8x64xf32>
    %27 = arith.addf %21, %26 : vector<8x64xf32>
    %28 = vector.extract_strided_slice %12 {offsets = [0, 1], sizes = [8, 1], strides = [1, 1]} : vector<8x4xf32> to vector<8x1xf32>
    %29 = vector.extract_strided_slice %13 {offsets = [1, 0], sizes = [1, 64], strides = [1, 1]} : vector<4x64xf32> to vector<1x64xf32>
    %30 = vector.broadcast %28 : vector<8x1xf32> to vector<8x64xf32>
    %31 = vector.broadcast %29 : vector<1x64xf32> to vector<8x64xf32>
    %32 = arith.mulf %30, %31 : vector<8x64xf32>
    %33 = arith.addf %27, %32 : vector<8x64xf32>
    %34 = vector.extract_strided_slice %12 {offsets = [0, 2], sizes = [8, 1], strides = [1, 1]} : vector<8x4xf32> to vector<8x1xf32>
    %35 = vector.extract_strided_slice %13 {offsets = [2, 0], sizes = [1, 64], strides = [1, 1]} : vector<4x64xf32> to vector<1x64xf32>
    %36 = vector.broadcast %34 : vector<8x1xf32> to vector<8x64xf32>
    %37 = vector.broadcast %35 : vector<1x64xf32> to vector<8x64xf32>
    %38 = arith.mulf %36, %37 : vector<8x64xf32>
    %39 = arith.addf %33, %38 : vector<8x64xf32>
    %40 = vector.extract_strided_slice %12 {offsets = [0, 3], sizes = [8, 1], strides = [1, 1]} : vector<8x4xf32> to vector<8x1xf32>
    %41 = vector.extract_strided_slice %13 {offsets = [3, 0], sizes = [1, 64], strides = [1, 1]} : vector<4x64xf32> to vector<1x64xf32>
    %42 = vector.broadcast %40 : vector<8x1xf32> to vector<8x64xf32>
    %43 = vector.broadcast %41 : vector<1x64xf32> to vector<8x64xf32>
    %44 = arith.mulf %42, %43 : vector<8x64xf32>
    %45 = arith.addf %39, %44 : vector<8x64xf32>
    %cst_17 = arith.constant 0.000000e+00 : f32
    %46 = vector.broadcast %cst_17 : f32 to vector<8x64xf32>
    %47 = arith.cmpf ogt, %45, %46 : vector<8x64xf32>
    %cst_18 = arith.constant 0.00999999977 : f32
    %48 = vector.broadcast %cst_18 : f32 to vector<8x64xf32>
    %49 = arith.mulf %48, %45 : vector<8x64xf32>
    %50 = arith.select %47, %45, %49 : vector<8x64xi1>, vector<8x64xf32>
    %51 = arith.mulf %11, %50 : vector<8x64xf32>
    %52 = arith.truncf %51 : vector<8x64xf32> to vector<8x64xbf16>
    %c0_19 = arith.constant 0 : index
    %c0_20 = arith.constant 0 : index
    %53 = vector.load %arg9[%c0_19, %c0_20] : memref<64x64xbf16, #tpu.memory_space<vmem>>, vector<64x64xbf16>
    %cst_21 = arith.constant dense<0.000000e+00> : vector<8x64xf32>
    %54 = tpu.matmul %52, %53, %cst_21 {dimension_numbers = #tpu.dot_dimension_numbers<[1], [0], [0], [1], [0, 0, 1, 1], [], []>} : vector<8x64xbf16>, vector<64x64xbf16>, vector<8x64xf32> -> vector<8x64xf32>
    %c0_22 = arith.constant 0 : index
    %c0_23 = arith.constant 0 : index
    %55 = vector.load %arg10[%c0_22, %c0_23] : memref<1x64xf32, #tpu.memory_space<vmem>>, vector<1x64xf32>
    %56 = vector.broadcast %55 : vector<1x64xf32> to vector<8x64xf32>
    %57 = arith.addf %54, %56 : vector<8x64xf32>
    %58 = math.tanh %57 : vector<8x64xf32>
    %c0_24 = arith.constant 0 : index
    %c0_25 = arith.constant 0 : index
    %59 = vector.load %arg11[%c0_24, %c0_25] : memref<4x64xbf16, #tpu.memory_space<vmem>>, vector<4x64xbf16>
    %60 = arith.truncf %58 : vector<8x64xf32> to vector<8x64xbf16>
    %cst_26 = arith.constant dense<0.000000e+00> : vector<4x8xf32>
    %61 = tpu.matmul %59, %60, %cst_26 {dimension_numbers = #tpu.dot_dimension_numbers<[1], [1], [0], [0], [0, 0, 1, 0], [], []>} : vector<4x64xbf16>, vector<8x64xbf16>, vector<4x8xf32> -> vector<4x8xf32>
    %c0_27 = arith.constant 0 : index
    %c0_28 = arith.constant 0 : index
    %62 = vector.load %arg12[%c0_27, %c0_28] : memref<4x1xf32, #tpu.memory_space<vmem>>, vector<4x1xf32>
    %63 = vector.broadcast %62 : vector<4x1xf32> to vector<4x8xf32>
    %64 = arith.addf %61, %63 : vector<4x8xf32>
    %c0_29 = arith.constant 0 : index
    %c0_30 = arith.constant 0 : index
    %65 = vector.load %arg13[%c0_29, %c0_30] : memref<4x8xf32, #tpu.memory_space<vmem>>, vector<4x8xf32>
    tpu.vector_store %arg13[%c0_29, %c0_30], %64 {strides = array<i32>} : memref<4x8xf32, #tpu.memory_space<vmem>>, vector<4x8xf32>,
    return
  }
  func.func @transform_0(%arg0: i32) -> (i32, i32) {
    %c0_i32 = arith.constant 0 : i32
    %c0_i32_0 = arith.constant 0 : i32
    return %arg0, %c0_i32 : i32, i32
  }
  func.func @transform_1(%arg0: i32) -> (i32, i32) {
    %c0_i32 = arith.constant 0 : i32
    %c0_i32_0 = arith.constant 0 : i32
    return %arg0, %c0_i32 : i32, i32
  }
  func.func @transform_2(%arg0: i32) -> (i32, i32) {
    %c0_i32 = arith.constant 0 : i32
    %c0_i32_0 = arith.constant 0 : i32
    return %arg0, %c0_i32 : i32, i32
  }
  func.func @transform_3(%arg0: i32) -> (i32, i32) {
    %c0_i32 = arith.constant 0 : i32
    %c0_i32_0 = arith.constant 0 : i32
    %c0_i32_1 = arith.constant 0 : i32
    return %c0_i32, %c0_i32_0 : i32, i32
  }
  func.func @transform_4(%arg0: i32) -> (i32, i32) {
    %c0_i32 = arith.constant 0 : i32
    %c0_i32_0 = arith.constant 0 : i32
    %c0_i32_1 = arith.constant 0 : i32
    return %c0_i32, %c0_i32_0 : i32, i32
  }
  func.func @transform_5(%arg0: i32) -> (i32, i32) {
    %c0_i32 = arith.constant 0 : i32
    %c0_i32_0 = arith.constant 0 : i32
    %c0_i32_1 = arith.constant 0 : i32
    return %c0_i32, %c0_i32_0 : i32, i32
  }
  func.func @transform_6(%arg0: i32) -> (i32, i32) {
    %c0_i32 = arith.constant 0 : i32
    %c0_i32_0 = arith.constant 0 : i32
    %c0_i32_1 = arith.constant 0 : i32
    return %c0_i32, %c0_i32_0 : i32, i32
  }
  func.func @transform_7(%arg0: i32) -> (i32, i32) {
    %c0_i32 = arith.constant 0 : i32
    %c0_i32_0 = arith.constant 0 : i32
    %c0_i32_1 = arith.constant 0 : i32
    return %c0_i32, %c0_i32_0 : i32, i32
  }
  func.func @transform_8(%arg0: i32) -> (i32, i32) {
    %c0_i32 = arith.constant 0 : i32
    %c0_i32_0 = arith.constant 0 : i32
    %c0_i32_1 = arith.constant 0 : i32
    return %c0_i32, %c0_i32_0 : i32, i32
  }
  func.func @transform_9(%arg0: i32) -> (i32, i32) {
    %c0_i32 = arith.constant 0 : i32
    %c0_i32_0 = arith.constant 0 : i32
    %c0_i32_1 = arith.constant 0 : i32
    return %c0_i32, %c0_i32_0 : i32, i32
  }
  func.func @transform_10(%arg0: i32) -> (i32, i32) {
    %c0_i32 = arith.constant 0 : i32
    %c0_i32_0 = arith.constant 0 : i32
    %c0_i32_1 = arith.constant 0 : i32
    return %c0_i32, %c0_i32_0 : i32, i32
  }
  func.func @transform_11(%arg0: i32) -> (i32, i32) {
    %c0_i32 = arith.constant 0 : i32
    %c0_i32_0 = arith.constant 0 : i32
    %c0_i32_1 = arith.constant 0 : i32
    return %c0_i32, %c0_i32_0 : i32, i32
  }
  func.func @transform_12(%arg0: i32) -> (i32, i32) {
    %c0_i32 = arith.constant 0 : i32
    %c0_i32_0 = arith.constant 0 : i32
    return %c0_i32, %arg0 : i32, i32
  }
}

</mosaic_0001>

<llo_original>
// kernel: value_net_forward.1
$region0: #{value_net_forward.1}
  #allocation0 [shape = 'u32[]', space=smem, size = 0x4, offset = 0x4, fixed_abs, tag = 'smem constant byte address 0x4 - core index']
  #allocation1 [shape = 'u32[144,128]{1,0:T(1,128)}', space=vmem, size = 0x12000, scoped, tag = 'internal scratch']
  %s0 = inlined_call_operand.vmem [shape: f32[8,16], index: 0, kind: input, shape index: {}]
  %s1 = inlined_call_operand.vmem [shape: f32[8,4], index: 1, kind: input, shape index: {}]
  %s2 = inlined_call_operand.vmem [shape: f32[8,1], index: 2, kind: input, shape index: {}]
  %s3 = inlined_call_operand.hbm [shape: bf16[16,64], index: 3, kind: input, shape index: {}]
  %s4 = inlined_call_operand.hbm [shape: f32[1,64], index: 4, kind: input, shape index: {}]
  %s5 = inlined_call_operand.hbm [shape: f32[4,64], index: 5, kind: input, shape index: {}]
  %s6 = inlined_call_operand.hbm [shape: f32[1,64], index: 6, kind: input, shape index: {}]
  %s7 = inlined_call_operand.hbm [shape: f32[1,64], index: 7, kind: input, shape index: {}]
  %s8 = inlined_call_operand.vmem [shape: bf16[64,64], index: 8, kind: input, shape index: {}]
  %s9 = inlined_call_operand.hbm [shape: f32[1,64], index: 9, kind: input, shape index: {}]
  %s10 = inlined_call_operand.vmem [shape: bf16[4,64], index: 10, kind: input, shape index: {}]
  %s11 = inlined_call_operand.vmem [shape: f32[4,1], index: 11, kind: input, shape index: {}]
  %s12 = inlined_call_operand.hbm [shape: f32[4,8], index: 12, kind: output, shape index: {}]
  %s13 = sld [smem:[#allocation0]]
  $region82: #{value_net_forward.1} parent=0
    _
  %s15 = ssub.s32 1, %s13
  %s16 = scalar_select 0, %s15, %s13
  $region1: #{value_net_forward.1} parent=0
    #allocation2 [shape = 'u8[4096]{0}', space=vmem, size = 0x1000, scoped, tag = 'input window, operand 3, single buffered']
    #allocation3 [shape = 's32[1]{0}', space=sflag, size = 0x4, scoped, tag = 'scoped memory for value_net_forward.1']
    #allocation4 [shape = 's32[1]{0}', space=sflag, size = 0x4, scoped, tag = 'scoped memory for value_net_forward.1']
    #allocation5 [shape = 'u8[512]{0}', space=vmem, size = 0x400, scoped, tag = 'input window, operand 4, single buffered']
    #allocation6 [shape = 's32[1]{0}', space=sflag, size = 0x4, scoped, tag = 'scoped memory for value_net_forward.1']
    #allocation7 [shape = 'u8[2048]{0}', space=vmem, size = 0x800, scoped, tag = 'input window, operand 5, single buffered']
    #allocation8 [shape = 'u8[512]{0}', space=vmem, size = 0x400, scoped, tag = 'input window, operand 6, single buffered']
    #allocation9 [shape = 's32[1]{0}', space=sflag, size = 0x4, scoped, tag = 'scoped memory for value_net_forward.1']
    #allocation10 [shape = 'u8[512]{0}', space=vmem, size = 0x400, scoped, tag = 'input window, operand 7, single buffered']
    #allocation11 [shape = 'u8[512]{0}', space=vmem, size = 0x400, scoped, tag = 'input window, operand 9, single buffered']
    #allocation12 [shape = 's32[1]{0}', space=sflag, size = 0x4, scoped, tag = 'scoped memory for value_net_forward.1']
    #allocation13 [shape = 'u8[2048]{0}', space=vmem, size = 0x800, scoped, tag = 'output window, operand 0, single buffered']
    %17 = vsyncpa [#allocation3], 0
    %18 = vsyncpa [#allocation6], 0
    %19 = vsyncpa [#allocation9], 0
    %20 = vsyncpa [#allocation12], 0
    %21 = vsyncpa [#allocation4], 0
    // Predicated region
    $region2: #{value_net_forward.1} parent=1 // pred_check
      _
    $region3: #{value_net_forward.1} parent=1 // pred_check_branch
      %23 = sbr.rel (0) target = $region5
    $region4: #{value_net_forward.1} parent=1 // pred_region
      _
    $region5: #{value_net_forward.1} parent=1 // pred_fallthru
      _
    // Predicated region
    $region6: #{value_net_forward.1} parent=1 // pred_check
      _
    $region7: #{value_net_forward.1} parent=1 // pred_check_branch
      %25 = sbr.rel (0) target = $region9
    $region8: #{value_net_forward.1} parent=1 // pred_region
      _
    $region9: #{value_net_forward.1} parent=1 // pred_fallthru
      _
    // Predicated region
    $region10: #{value_net_forward.1} parent=1 // pred_check
      _
    $region11: #{value_net_forward.1} parent=1 // pred_check_branch
      %27 = sbr.rel (0) target = $region13
    $region12: #{value_net_forward.1} parent=1 // pred_region
      _
    $region13: #{value_net_forward.1} parent=1 // pred_fallthru
      _
    // Predicated region
    $region14: #{value_net_forward.1} parent=1 // pred_check
      _
    $region15: #{value_net_forward.1} parent=1 // pred_check_branch
      %29 = sbr.rel (0) target = $region17
    $region16: #{value_net_forward.1} parent=1 // pred_region
      %s31 = ssub.s32 128, 128
      %32 = vsyncadd [#allocation3], %s31
      %s33 = sshll.u32 [#allocation2], 4
      %s34 = int_to_ptr.vmem [resolvable:$true] %s33
      %39 = dma.hbm_to_vmem [thread:$0]  %s3, 128, %s34, [#allocation3], 64, 64, 4
    $region17: #{value_net_forward.1} parent=1 // pred_fallthru
      _
    // Predicated region
    $region18: #{value_net_forward.1} parent=1 // pred_check
      _
    $region19: #{value_net_forward.1} parent=1 // pred_check_branch
      %41 = sbr.rel (0) target = $region21
    $region20: #{value_net_forward.1} parent=1 // pred_region
      %s43 = ssub.s32 16, 16
      %44 = vsyncadd [#allocation6], %s43
      %s46 = sshll.u32 [#allocation5], 4
      %s47 = int_to_ptr.vmem [resolvable:$true] %s46
      %49 = dma.hbm_to_vmem [thread:$0]  %s4, 16, %s47, [#allocation6]
    $region21: #{value_net_forward.1} parent=1 // pred_fallthru
      _
    // Predicated region
    $region22: #{value_net_forward.1} parent=1 // pred_check
      _
    $region23: #{value_net_forward.1} parent=1 // pred_check_branch
      %51 = sbr.rel (0) target = $region25
    $region24: #{value_net_forward.1} parent=1 // pred_region
      %s53 = ssub.s32 64, 64
      %54 = vsyncadd [#allocation6], %s53
      %s56 = sshll.u32 [#allocation7], 4
      %s57 = int_to_ptr.vmem [resolvable:$true] %s56
      %59 = dma.hbm_to_vmem [thread:$0]  %s5, 64, %s57, [#allocation6]
    $region25: #{value_net_forward.1} parent=1 // pred_fallthru
      _
    // Predicated region
    $region26: #{value_net_forward.1} parent=1 // pred_check
      _
    $region27: #{value_net_forward.1} parent=1 // pred_check_branch
      %61 = sbr.rel (0) target = $region29
    $region28: #{value_net_forward.1} parent=1 // pred_region
      %s63 = ssub.s32 16, 16
      %64 = vsyncadd [#allocation9], %s63
      %s66 = sshll.u32 [#allocation8], 4
      %s67 = int_to_ptr.vmem [resolvable:$true] %s66
      %69 = dma.hbm_to_vmem [thread:$0]  %s6, 16, %s67, [#allocation9]
    $region29: #{value_net_forward.1} parent=1 // pred_fallthru
      _
    // Predicated region
    $region30: #{value_net_forward.1} parent=1 // pred_check
      _
    $region31: #{value_net_forward.1} parent=1 // pred_check_branch
      %71 = sbr.rel (0) target = $region33
    $region32: #{value_net_forward.1} parent=1 // pred_region
      %s73 = ssub.s32 16, 16
      %74 = vsyncadd [#allocation9], %s73
      %s76 = sshll.u32 [#allocation10], 4
      %s77 = int_to_ptr.vmem [resolvable:$true] %s76
      %79 = dma.hbm_to_vmem [thread:$0]  %s7, 16, %s77, [#allocation9]
    $region33: #{value_net_forward.1} parent=1 // pred_fallthru
      _
    // Predicated region
    $region34: #{value_net_forward.1} parent=1 // pred_check
      _
    $region35: #{value_net_forward.1} parent=1 // pred_check_branch
      %81 = sbr.rel (0) target = $region37
    $region36: #{value_net_forward.1} parent=1 // pred_region
      _
    $region37: #{value_net_forward.1} parent=1 // pred_fallthru
      _
    // Predicated region
    $region38: #{value_net_forward.1} parent=1 // pred_check
      _
    $region39: #{value_net_forward.1} parent=1 // pred_check_branch
      %83 = sbr.rel (0) target = $region41
    $region40: #{value_net_forward.1} parent=1 // pred_region
      %s85 = ssub.s32 16, 16
      %86 = vsyncadd [#allocation12], %s85
      %s88 = sshll.u32 [#allocation11], 4
      %s89 = int_to_ptr.vmem [resolvable:$true] %s88
      %91 = dma.hbm_to_vmem [thread:$0]  %s9, 16, %s89, [#allocation12]
    $region41: #{value_net_forward.1} parent=1 // pred_fallthru
      _
    // Predicated region
    $region42: #{value_net_forward.1} parent=1 // pred_check
      _
    $region43: #{value_net_forward.1} parent=1 // pred_check_branch
      %93 = sbr.rel (0) target = $region45
    $region44: #{value_net_forward.1} parent=1 // pred_region
      _
    $region45: #{value_net_forward.1} parent=1 // pred_fallthru
      _
    // Predicated region
    $region46: #{value_net_forward.1} parent=1 // pred_check
      _
    $region47: #{value_net_forward.1} parent=1 // pred_check_branch
      %95 = sbr.rel (0) target = $region49
    $region48: #{value_net_forward.1} parent=1 // pred_region
      _
    $region49: #{value_net_forward.1} parent=1 // pred_fallthru
      _
    // Predicated region
    $region50: #{value_net_forward.1} parent=1 // pred_check
      _
    $region51: #{value_net_forward.1} parent=1 // pred_check_branch
      %97 = sbr.rel (0) target = $region53
    $region52: #{value_net_forward.1} parent=1 // pred_region
      %98 = dma.done [#allocation3], 128
    $region53: #{value_net_forward.1} parent=1 // pred_fallthru
      _
    // Predicated region
    $region54: #{value_net_forward.1} parent=1 // pred_check
      _
    $region55: #{value_net_forward.1} parent=1 // pred_check_branch
      %100 = sbr.rel (0) target = $region57
    $region56: #{value_net_forward.1} parent=1 // pred_region
      %101 = dma.done [#allocation6], 16
    $region57: #{value_net_forward.1} parent=1 // pred_fallthru
      _
    // Predicated region
    $region58: #{value_net_forward.1} parent=1 // pred_check
      _
    $region59: #{value_net_forward.1} parent=1 // pred_check_branch
      %103 = sbr.rel (0) target = $region61
    $region60: #{value_net_forward.1} parent=1 // pred_region
      %104 = dma.done [#allocation6], 64
    $region61: #{value_net_forward.1} parent=1 // pred_fallthru
      _
    // Predicated region
    $region62: #{value_net_forward.1} parent=1 // pred_check
      _
    $region63: #{value_net_forward.1} parent=1 // pred_check_branch
      %106 = sbr.rel (0) target = $region65
    $region64: #{value_net_forward.1} parent=1 // pred_region
      %107 = dma.done [#allocation9], 16
    $region65: #{value_net_forward.1} parent=1 // pred_fallthru
      _
    // Predicated region
    $region66: #{value_net_forward.1} parent=1 // pred_check
      _
    $region67: #{value_net_forward.1} parent=1 // pred_check_branch
      %109 = sbr.rel (0) target = $region69
    $region68: #{value_net_forward.1} parent=1 // pred_region
      %110 = dma.done [#allocation9], 16
    $region69: #{value_net_forward.1} parent=1 // pred_fallthru
      _
    // Predicated region
    $region70: #{value_net_forward.1} parent=1 // pred_check
      _
    $region71: #{value_net_forward.1} parent=1 // pred_check_branch
      %112 = sbr.rel (0) target = $region73
    $region72: #{value_net_forward.1} parent=1 // pred_region
      %113 = dma.done [#allocation12], 16
    $region73: #{value_net_forward.1} parent=1 // pred_fallthru
      _
    %v115 = vld [vmem:[%s0] sm:$0xff]
    %v116 = vpack.c.bf16 %v115, %v115
    %v117 = vld [vmem:[#allocation2] sm:$0xf]
    %v118 = vld [vmem:[#allocation2 + $0x4] sm:$0xf]
    %v119 = vld [vmem:[#allocation5] sm:$0x1]
    %v121 = vlaneseq
    %v122 = vshrl.u32 %v121, 7
    %v123 = vsub.s32 0, %v122
    %v124 = vrot.slane %v119, %v123
    %v128 = vunpack.c.l.b16 %v117
    %v129 = vunpack.c.l.b16 %v118
    %v130 = vpack.c.b16 %v129, %v128
    %vm132 = vcmask 130048
    %v134 = vsel %vm132, %v116, 0
    %136 = vmatprep.subr.bf16.mxu0 0
    %137 = vmatpush1.bf16.msra.mxu0 0
    %138 = vmatprep.subr.bf16.mxu0 0
    %139 = vmatpush1.bf16.msra.mxu0 0
    %140 = vmatprep.subr.bf16.mxu0 0
    %141 = vmatpush1.bf16.msra.mxu0 0
    %142 = vmatprep.subr.bf16.mxu0 0
    %143 = vmatpush1.bf16.msra.mxu0 0
    %144 = vmatprep.subr.bf16.mxu0 0
    %145 = vmatpush1.bf16.msra.mxu0 0
    %146 = vmatprep.subr.bf16.mxu0 0
    %147 = vmatpush1.bf16.msra.mxu0 0
    %148 = vmatprep.subr.bf16.mxu0 0
    %149 = vmatpush1.bf16.msra.mxu0 0
    %150 = vmatprep.subr.bf16.mxu0 0
    %151 = vmatpush1.bf16.msra.mxu0 %v130
    %152 = vmatprep.subr.bf16.mxu0 0
    %153 = vmatpush2.bf16.msra.mxu0 0
    %154 = vmatprep.subr.bf16.mxu0 0
    %155 = vmatpush2.bf16.msra.mxu0 0
    %156 = vmatprep.subr.bf16.mxu0 0
    %157 = vmatpush2.bf16.msra.mxu0 0
    %158 = vmatprep.subr.bf16.mxu0 0
    %159 = vmatpush2.bf16.msra.mxu0 0
    %160 = vmatprep.subr.bf16.mxu0 0
    %161 = vmatpush2.bf16.msra.mxu0 0
    %162 = vmatprep.subr.bf16.mxu0 0
    %163 = vmatpush2.bf16.msra.mxu0 0
    %164 = vmatprep.subr.bf16.mxu0 0
    %165 = vmatpush2.bf16.msra.mxu0 0
    %166 = vmatprep.subr.bf16.mxu0 0
    %167 = vmatpush2.bf16.msra.mxu0 0
    %168 = vmatprep.mubr.bf16.mxu0 0
    %169 = vmatmul.mubr.bf16.gmra.mxu0 %v134
    %v170 = vpop.f32.mrf.mxu0
    %v171 = vadd.f32 %v124, %v170
    %v172 = vpop.f32.mrf.mxu0
    %v173 = vpop.f32.mrf.mxu0
    %v174 = vpop.f32.mrf.mxu0
    %175 = vdwg.mxu0
    %vm176 = vcmp.gt.f32.partialorder %v171, 0.0
    %v177 = vmul.f32 %v171, 0.01
    %v178 = vsel %vm176, %v171, %v177
    %v179 = vld [vmem:[%s1] sm:$0xff]
    %v180 = vld [vmem:[#allocation7] sm:$0xf]
    %v181 = vld [vmem:[%s2] sm:$0xff]
    %v182 = vld [vmem:[#allocation8] sm:$0x1]
    %184 = vset.pattern.permute.xlu0 0
    %185 = vperm.xlu0 %184, %v181
    %v186 = vpop.permute.xlu0 %185
    %v189 = vlaneseq
    %v190 = vshrl.u32 %v189, 7
    %v191 = vsub.s32 0, %v190
    %v192 = vrot.slane %v182, %v191
    %v194 = vmul.f32 %v186, %v192
    %v195 = vld [vmem:[#allocation10] sm:$0x1]
    %v197 = vlaneseq
    %v198 = vshrl.u32 %v197, 7
    %v199 = vsub.s32 0, %v198
    %v200 = vrot.slane %v195, %v199
    %v202 = vadd.f32 %v194, %v200
    %204 = vset.pattern.permute.xlu0 0
    %205 = vperm.xlu0 %204, %v179
    %v206 = vpop.permute.xlu0 %205
    %v208 = vlaneseq
    %v209 = vshrl.u32 %v208, 7
    %v210 = vsub.s32 0, %v209
    %v211 = vrot.slane %v180, %v210
    %v212 = vmul.f32 %v206, %v211
    %v213 = vadd.f32 %v202, %v212
    %214 = vset.pattern.permute.xlu0 1
    %215 = vperm.xlu0 %214, %v179
    %v216 = vpop.permute.xlu0 %215
    %v218 = vlaneseq
    %v219 = vshrl.u32 %v218, 7
    %v220 = vsub.s32 1, %v219
    %v221 = vrot.slane %v180, %v220
    %v222 = vmul.f32 %v216, %v221
    %v223 = vadd.f32 %v213, %v222
    %224 = vset.pattern.permute.xlu0 2
    %225 = vperm.xlu0 %224, %v179
    %v226 = vpop.permute.xlu0 %225
    %v228 = vlaneseq
    %v229 = vshrl.u32 %v228, 7
    %v230 = vsub.s32 2, %v229
    %v231 = vrot.slane %v180, %v230
    %v232 = vmul.f32 %v226, %v231
    %v233 = vadd.f32 %v223, %v232
    %234 = vset.pattern.permute.xlu0 3
    %235 = vperm.xlu0 %234, %v179
    %v236 = vpop.permute.xlu0 %235
    %v238 = vlaneseq
    %v239 = vshrl.u32 %v238, 7
    %v240 = vsub.s32 3, %v239
    %v241 = vrot.slane %v180, %v240
    %v242 = vmul.f32 %v236, %v241
    %v243 = vadd.f32 %v233, %v242
    %vm244 = vcmp.gt.f32.partialorder %v243, 0.0
    %v245 = vmul.f32 %v243, 0.01
    %v246 = vsel %vm244, %v243, %v245
    %v247 = vmul.f32 %v178, %v246
    %v248 = vpack.c.bf16 %v247, %v247
    %v249 = vld [vmem:[%s8] sm:$0xf]
    %v250 = vld [vmem:[%s8 + $0x4] sm:$0xf]
    %v251 = vld [vmem:[%s8 + $0x8] sm:$0xf]
    %v252 = vld [vmem:[%s8 + $0xc] sm:$0xf]
    %v253 = vld [vmem:[%s8 + $0x10] sm:$0xf]
    %v254 = vld [vmem:[%s8 + $0x14] sm:$0xf]
    %v255 = vld [vmem:[%s8 + $0x18] sm:$0xf]
    %v256 = vld [vmem:[%s8 + $0x1c] sm:$0xf]
    %v257 = vld [vmem:[#allocation11] sm:$0x1]
    %v259 = vlaneseq
    %v260 = vshrl.u32 %v259, 7
    %v261 = vsub.s32 0, %v260
    %v262 = vrot.slane %v257, %v261
    %v272 = vunpack.c.l.b16 %v249
    %v273 = vunpack.c.l.b16 %v250
    %v274 = vunpack.c.l.b16 %v251
    %v275 = vunpack.c.l.b16 %v252
    %v276 = vunpack.c.l.b16 %v253
    %v277 = vunpack.c.l.b16 %v254
    %v278 = vunpack.c.l.b16 %v255
    %v279 = vunpack.c.l.b16 %v256
    %v280 = vpack.c.b16 %v273, %v272
    %v281 = vpack.c.b16 %v275, %v274
    %v282 = vpack.c.b16 %v277, %v276
    %v283 = vpack.c.b16 %v279, %v278
    %vm288 = vcmask 523264
    %v290 = vsel %vm288, %v248, 0
    %292 = vmatprep.subr.bf16.mxu0 0
    %293 = vmatpush1.bf16.msra.mxu0 0
    %294 = vmatprep.subr.bf16.mxu0 0
    %295 = vmatpush1.bf16.msra.mxu0 0
    %296 = vmatprep.subr.bf16.mxu0 0
    %297 = vmatpush1.bf16.msra.mxu0 0
    %298 = vmatprep.subr.bf16.mxu0 0
    %299 = vmatpush1.bf16.msra.mxu0 0
    %300 = vmatprep.subr.bf16.mxu0 0
    %301 = vmatpush1.bf16.msra.mxu0 %v283
    %302 = vmatprep.subr.bf16.mxu0 0
    %303 = vmatpush1.bf16.msra.mxu0 %v282
    %304 = vmatprep.subr.bf16.mxu0 0
    %305 = vmatpush1.bf16.msra.mxu0 %v281
    %306 = vmatprep.subr.bf16.mxu0 0
    %307 = vmatpush1.bf16.msra.mxu0 %v280
    %308 = vmatprep.subr.bf16.mxu0 0
    %309 = vmatpush2.bf16.msra.mxu0 0
    %310 = vmatprep.subr.bf16.mxu0 0
    %311 = vmatpush2.bf16.msra.mxu0 0
    %312 = vmatprep.subr.bf16.mxu0 0
    %313 = vmatpush2.bf16.msra.mxu0 0
    %314 = vmatprep.subr.bf16.mxu0 0
    %315 = vmatpush2.bf16.msra.mxu0 0
    %316 = vmatprep.subr.bf16.mxu0 0
    %317 = vmatpush2.bf16.msra.mxu0 0
    %318 = vmatprep.subr.bf16.mxu0 0
    %319 = vmatpush2.bf16.msra.mxu0 0
    %320 = vmatprep.subr.bf16.mxu0 0
    %321 = vmatpush2.bf16.msra.mxu0 0
    %322 = vmatprep.subr.bf16.mxu0 0
    %323 = vmatpush2.bf16.msra.mxu0 0
    %324 = vmatprep.mubr.bf16.mxu0 0
    %325 = vmatmul.mubr.bf16.gmra.mxu0 %v290
    %v326 = vpop.f32.mrf.mxu0
    %v327 = vadd.f32 %v262, %v326
    %v328 = vpop.f32.mrf.mxu0
    %v329 = vpop.f32.mrf.mxu0
    %v330 = vpop.f32.mrf.mxu0
    %331 = vdwg.mxu0
    %v332 = vtanh.pop %v327
    %v333 = vld [vmem:[%s10] sm:$0x3]
    %v334 = vpack.c.bf16 %v332, %v332
    %v335 = vld [vmem:[%s11] sm:$0xf]
    %337 = vset.pattern.permute.xlu0 0
    %338 = vperm.xlu0 %337, %v335
    %v339 = vpop.permute.xlu0 %338
    %v342 = vsel %vm288, %v333, 0
    %v345 = vsel %vm288, %v334, 0
    %347 = vmatprep.subr.bf16.mxu0 0
    %348 = vmatpush1.bf16.xpose.msra.mxu0 0
    %349 = vmatprep.subr.bf16.mxu0 0
    %350 = vmatpush1.bf16.xpose.msra.mxu0 0
    %351 = vmatprep.subr.bf16.mxu0 0
    %352 = vmatpush1.bf16.xpose.msra.mxu0 0
    %353 = vmatprep.subr.bf16.mxu0 0
    %354 = vmatpush1.bf16.xpose.msra.mxu0 0
    %355 = vmatprep.subr.bf16.mxu0 0
    %356 = vmatpush1.bf16.xpose.msra.mxu0 0
    %357 = vmatprep.subr.bf16.mxu0 0
    %358 = vmatpush1.bf16.xpose.msra.mxu0 0
    %359 = vmatprep.subr.bf16.mxu0 0
    %360 = vmatpush1.bf16.xpose.msra.mxu0 0
    %361 = vmatprep.subr.bf16.mxu0 0
    %362 = vmatpush1.bf16.xpose.msra.mxu0 %v345
    %363 = vmatprep.subr.bf16.mxu0 0
    %364 = vmatpush2.bf16.xpose.msra.mxu0 0
    %365 = vmatprep.subr.bf16.mxu0 0
    %366 = vmatpush2.bf16.xpose.msra.mxu0 0
    %367 = vmatprep.subr.bf16.mxu0 0
    %368 = vmatpush2.bf16.xpose.msra.mxu0 0
    %369 = vmatprep.subr.bf16.mxu0 0
    %370 = vmatpush2.bf16.xpose.msra.mxu0 0
    %371 = vmatprep.subr.bf16.mxu0 0
    %372 = vmatpush2.bf16.xpose.msra.mxu0 0
    %373 = vmatprep.subr.bf16.mxu0 0
    %374 = vmatpush2.bf16.xpose.msra.mxu0 0
    %375 = vmatprep.subr.bf16.mxu0 0
    %376 = vmatpush2.bf16.xpose.msra.mxu0 0
    %377 = vmatprep.subr.bf16.mxu0 0
    %378 = vmatpush2.bf16.xpose.msra.mxu0 0
    %379 = vmatprep.mubr.bf16.mxu0 0
    %380 = vmatmul.mubr.bf16.gmra.mxu0 %v342
    %v381 = vpop.f32.mrf.mxu0
    %v382 = vadd.f32 %v339, %v381
    %v383 = vpop.f32.mrf.mxu0
    %v384 = vpop.f32.mrf.mxu0
    %v385 = vpop.f32.mrf.mxu0
    %386 = vdwg.mxu0
    %vm387 = vcmask 60416
    %388 = vst.msk [vmem:[#allocation13] sm:$0xf] %vm387, %v382
    // Predicated region
    $region74: #{value_net_forward.1} parent=1 // pred_check
      _
    $region75: #{value_net_forward.1} parent=1 // pred_check_branch
      %390 = sbr.rel (0) target = $region77
    $region76: #{value_net_forward.1} parent=1 // pred_region
      %s392 = ssub.s32 64, 64
      %393 = vsyncadd [#allocation4], %s392
      %s395 = sshll.u32 [#allocation13], 4
      %s396 = int_to_ptr.vmem [resolvable:$true] %s395
      %398 = dma.vmem_to_hbm [thread:$0]  %s396, 64, %s12, [#allocation4]
    $region77: #{value_net_forward.1} parent=1 // pred_fallthru
      _
    // Predicated region
    $region78: #{value_net_forward.1} parent=1 // pred_check
      _
    $region79: #{value_net_forward.1} parent=1 // pred_check_branch
      %400 = sbr.rel (0) target = $region81
    $region80: #{value_net_forward.1} parent=1 // pred_region
      %401 = dma.done [#allocation4], 64
    $region81: #{value_net_forward.1} parent=1 // pred_fallthru
      _
    %402 = vsyncpa [#allocation3], 1
    %403 = vsyncpa [#allocation6], 1
    %404 = vsyncpa [#allocation9], 1
    %405 = vsyncpa [#allocation12], 1
    %406 = vsyncpa [#allocation4], 1

</llo_original>
